<compile_context>
chip_gen: v5e
topology: v5e:2x2
jax: 0.10.0
libtpu: 0.0.40
codegen_flags: <defaults>
</compile_context>

<pallas_src>
import functools

import jax
import jax.numpy as jnp
from jax.experimental import pallas as pl
from jax.experimental.pallas import tpu as pltpu

LANE = 128      # lane (last-dim) width
SUBLANE = 8     # sublane (second-to-last dim) width


def _round_up(x, m):
    return ((x + m - 1) // m) * m


def _bias_block(b, rows):
    """b: (SUBLANE, F) pre-broadcast bias.

    If the activation block has exactly SUBLANE rows the add is a plain aligned
    vreg add; otherwise fall back to a (1, F) -> (rows, F) broadcast.
    """
    if rows == b.shape[0]:
        return b
    return b[0:1]


# ---------------------------------------------------------------------------
# Fused MLP kernel: static Python loop over layers; the activation `h` never
# leaves vregs/VMEM.  Weights bf16, accumulation / bias / ReLU in f32.
# ---------------------------------------------------------------------------
def _fused_mlp_kernel(x_ref, wf_ref, bf_ref, wm_ref, bm_ref, wl_ref, bl_ref,
                      o_ref, *, num_mid: int):
    h = x_ref[...]                                   # (Bp, Fi) f32
    rows = h.shape[0]

    # First layer: (Bp, Fi) @ (Fi, Fh) + b, ReLU.
    h = jnp.dot(h.astype(wf_ref.dtype), wf_ref[...],
                preferred_element_type=jnp.float32)
    h = jnp.maximum(h + _bias_block(bf_ref[...], rows), 0.0)

    # Hidden -> hidden layers (static unroll; weights resident in VMEM).
    for i in range(num_mid):
        h = jnp.dot(h.astype(wm_ref.dtype), wm_ref[i],
                    preferred_element_type=jnp.float32)
        h = jnp.maximum(h + _bias_block(bm_ref[i], rows), 0.0)

    # Last layer: no ReLU.
    h = jnp.dot(h.astype(wl_ref.dtype), wl_ref[...],
                preferred_element_type=jnp.float32)
    h = h + _bias_block(bl_ref[...], rows)
    o_ref[...] = h.astype(o_ref.dtype)


def fused_mlp(x_p, wf, bf, wm, bm, wl, bl, *, num_mid: int):
    """x_p: (Bp, Fi) padded f32 input; weights bf16, biases f32 (SUBLANE, F)."""
    Bp, Fi = x_p.shape
    Fh = wf.shape[1]
    Fo = wl.shape[1]
    Lm = wm.shape[0]

    operands = (x_p, wf, bf, wm, bm, wl, bl)
    resident = sum(int(a.size) * a.dtype.itemsize for a in operands)
    resident += Bp * Fo * 4                       # output block
    # Double-buffered operands + headroom; clamp to a budget that is safe on
    # every generation (v7x: 64 MiB physical VMEM per TensorCore).
    vmem_budget = int(min(64 * 2**20, max(32 * 2**20, 2 * resident + 2 * 2**20)))

    return pl.pallas_call(
        functools.partial(_fused_mlp_kernel, num_mid=num_mid),
        out_shape=jax.ShapeDtypeStruct((Bp, Fo), jnp.float32),
        in_specs=[
            pl.BlockSpec((Bp, Fi), lambda: (0, 0)),
            pl.BlockSpec((Fi, Fh), lambda: (0, 0)),
            pl.BlockSpec((SUBLANE, Fh), lambda: (0, 0)),
            pl.BlockSpec((Lm, Fh, Fh), lambda: (0, 0, 0)),
            pl.BlockSpec((Lm, SUBLANE, Fh), lambda: (0, 0, 0)),
            pl.BlockSpec((Fh, Fo), lambda: (0, 0)),
            pl.BlockSpec((SUBLANE, Fo), lambda: (0, 0)),
        ],
        out_specs=pl.BlockSpec((Bp, Fo), lambda: (0, 0)),
        compiler_params=pltpu.CompilerParams(vmem_limit_bytes=vmem_budget),
    )(*operands)


# ---------------------------------------------------------------------------
# Parameter init / one-time packing
# ---------------------------------------------------------------------------
def init_simple_dnn_params(key, input_size=12, hidden_size=32, output_size=12,
                           num_layers=3):
    """Deterministic init (uniform, like torch's default range).

    Weights stored as (in, out) == transposed torch Linear weights, so the
    kernel's y = x @ W + b matches torch's y = x @ W_pt.T + b exactly.
    """
    params = []
    dims = [input_size] + [hidden_size] * num_layers + [output_size]
    for i in range(len(dims) - 1):
        d_in, d_out = dims[i], dims[i + 1]
        key, kw, kb = jax.random.split(key, 3)
        bound = 1.0 / jnp.sqrt(jnp.float32(d_in))
        w = jax.random.uniform(kw, (d_in, d_out), jnp.float32, -bound, bound)
        b = jax.random.uniform(kb, (1, d_out), jnp.float32, -bound, bound)
        params.append((w, b))
    return params


def pack_params(params, weight_dtype=jnp.bfloat16):
    """Pad + stack ONCE at init (not per forward call).

    Zero padding is exact: padded weight rows/cols and bias lanes are 0 and
    ReLU(0)=0, so real lanes reproduce the unpadded math (up to bf16 rounding
    of the weights/activations; accumulation stays f32).
    """
    assert len(params) >= 2, "expect at least one hidden Linear and the output Linear"
    d_in = params[0][0].shape[0]
    d_hidden = params[0][0].shape[1]
    d_out = params[-1][0].shape[1]
    Fi = _round_up(d_in, LANE)
    Fh = _round_up(d_hidden, LANE)
    Fo = _round_up(d_out, LANE)

    def pad_w(w, r, c):
        return jnp.zeros((r, c), weight_dtype).at[:w.shape[0], :w.shape[1]].set(
            w.astype(weight_dtype))

    def pad_b(b, c):
        b = b.reshape(1, -1).astype(jnp.float32)
        bb = jnp.broadcast_to(b, (SUBLANE, b.shape[1]))
        return jnp.zeros((SUBLANE, c), jnp.float32).at[:, :b.shape[1]].set(bb)

    wf = pad_w(params[0][0], Fi, Fh)
    bf = pad_b(params[0][1], Fh)
    wl = pad_w(params[-1][0], Fh, Fo)
    bl = pad_b(params[-1][1], Fo)

    mids = params[1:-1]
    num_mid = len(mids)
    if num_mid == 0:
        # Dummy (never read: the static layer loop has zero iterations).
        wm = jnp.zeros((1, Fh, Fh), weight_dtype)
        bm = jnp.zeros((1, SUBLANE, Fh), jnp.float32)
    else:
        wm = jnp.stack([pad_w(w, Fh, Fh) for w, _ in mids])
        bm = jnp.stack([pad_b(b, Fh) for _, b in mids])

    packed = dict(wf=wf, bf=bf, wm=wm, bm=bm, wl=wl, bl=bl)
    meta = dict(d_in=d_in, d_out=d_out, Fi=Fi, num_mid=num_mid)
    return packed, meta


def make_simple_dnn_forward(params, weight_dtype=jnp.bfloat16):
    """Returns a jitted forward(x) closure.  Packing happens exactly once here."""
    packed, meta = pack_params(params, weight_dtype)
    d_in, d_out = meta["d_in"], meta["d_out"]
    Fi, num_mid = meta["Fi"], meta["num_mid"]

    @jax.jit
    def forward(x):
        B = x.shape[0]
        Bp = _round_up(max(B, SUBLANE), SUBLANE)
        x_p = jnp.zeros((Bp, Fi), jnp.float32).at[:B, :d_in].set(
            x.astype(jnp.float32))
        out_p = fused_mlp(x_p, packed["wf"], packed["bf"], packed["wm"],
                          packed["bm"], packed["wl"], packed["bl"],
                          num_mid=num_mid)
        return out_p[:B, :d_out]

    return forward


def simple_dnn_reference(params, x):
    h = x
    n = len(params)
    for i, (w, b) in enumerate(params):
        h = h @ w + b
        if i != n - 1:
            h = jnp.maximum(h, 0.0)
    return h


if __name__ == "__main__":
    key = jax.random.PRNGKey(0)
    key, kx = jax.random.split(key)

    batch = 8
    input_size = 12
    hidden_size = 32
    output_size = 12
    num_layers = 3  # stand-in for args.num_layers

    params = init_simple_dnn_params(key, input_size, hidden_size,
                                    output_size, num_layers)
    x = jax.random.normal(kx, (batch, input_size), jnp.float32)

    forward = make_simple_dnn_forward(params)   # packs weights ONCE
    out = forward(x)
    out = jax.block_until_ready(out)
    out = jax.block_until_ready(forward(x))     # second call: no re-packing/re-trace

    ref = simple_dnn_reference(params, x)
    assert out.shape == (batch, output_size)
    # bf16 weights / activation casts (f32 accumulation) -> loosened tolerance.
    assert jnp.allclose(out, ref, atol=3e-2, rtol=3e-2), (
        float(jnp.max(jnp.abs(out - ref))))

    print("KERNEL_OK")
</pallas_src>

<mosaic_0001>
module attributes {stable_mosaic.version = 11 : i64} {
  func.func @_fused_mlp_kernel(%arg0: memref<8x128xf32, #tpu.memory_space<vmem>>, %arg1: memref<128x128xbf16, #tpu.memory_space<vmem>>, %arg2: memref<8x128xf32, #tpu.memory_space<vmem>>, %arg3: memref<2x128x128xbf16, #tpu.memory_space<vmem>>, %arg4: memref<2x8x128xf32, #tpu.memory_space<vmem>>, %arg5: memref<128x128xbf16, #tpu.memory_space<vmem>>, %arg6: memref<8x128xf32, #tpu.memory_space<vmem>>, %arg7: memref<8x128xf32, #tpu.memory_space<vmem>>) attributes {dimension_semantics = [], scalar_prefetch = 0 : i64, scratch_operands = 0 : i64, tpu.core_type = #tpu.core_type<tc>} {
    %c0 = arith.constant 0 : index
    %c0_0 = arith.constant 0 : index
    %0 = vector.load %arg0[%c0, %c0_0] : memref<8x128xf32, #tpu.memory_space<vmem>>, vector<8x128xf32>
    %1 = arith.truncf %0 : vector<8x128xf32> to vector<8x128xbf16>
    %c0_1 = arith.constant 0 : index
    %c0_2 = arith.constant 0 : index
    %2 = vector.load %arg1[%c0_1, %c0_2] : memref<128x128xbf16, #tpu.memory_space<vmem>>, vector<128x128xbf16>
    %cst = arith.constant dense<0.000000e+00> : vector<8x128xf32>
    %3 = tpu.matmul %1, %2, %cst {dimension_numbers = #tpu.dot_dimension_numbers<[1], [0], [0], [1], [0, 0, 1, 1], [], []>} : vector<8x128xbf16>, vector<128x128xbf16>, vector<8x128xf32> -> vector<8x128xf32>
    %c0_3 = arith.constant 0 : index
    %c0_4 = arith.constant 0 : index
    %4 = vector.load %arg2[%c0_3, %c0_4] : memref<8x128xf32, #tpu.memory_space<vmem>>, vector<8x128xf32>
    %5 = arith.addf %3, %4 : vector<8x128xf32>
    %cst_5 = arith.constant 0.000000e+00 : f32
    %6 = vector.broadcast %cst_5 : f32 to vector<8x128xf32>
    %7 = arith.maximumf %5, %6 : vector<8x128xf32>
    %8 = arith.truncf %7 : vector<8x128xf32> to vector<8x128xbf16>
    %c0_6 = arith.constant 0 : index
    %c0_7 = arith.constant 0 : index
    %c0_8 = arith.constant 0 : index
    %9 = vector.load %arg3[%c0_6, %c0_7, %c0_8] : memref<2x128x128xbf16, #tpu.memory_space<vmem>>, vector<1x128x128xbf16>
    %10 = vector.shape_cast %9 : vector<1x128x128xbf16> to vector<128x128xbf16>
    %cst_9 = arith.constant dense<0.000000e+00> : vector<8x128xf32>
    %11 = tpu.matmul %8, %10, %cst_9 {dimension_numbers = #tpu.dot_dimension_numbers<[1], [0], [0], [1], [0, 0, 1, 1], [], []>} : vector<8x128xbf16>, vector<128x128xbf16>, vector<8x128xf32> -> vector<8x128xf32>
    %c0_10 = arith.constant 0 : index
    %c0_11 = arith.constant 0 : index
    %c0_12 = arith.constant 0 : index
    %12 = vector.load %arg4[%c0_10, %c0_11, %c0_12] : memref<2x8x128xf32, #tpu.memory_space<vmem>>, vector<1x8x128xf32>
    %13 = vector.shape_cast %12 : vector<1x8x128xf32> to vector<8x128xf32>
    %14 = arith.addf %11, %13 : vector<8x128xf32>
    %cst_13 = arith.constant 0.000000e+00 : f32
    %15 = vector.broadcast %cst_13 : f32 to vector<8x128xf32>
    %16 = arith.maximumf %14, %15 : vector<8x128xf32>
    %17 = arith.truncf %16 : vector<8x128xf32> to vector<8x128xbf16>
    %c1 = arith.constant 1 : index
    %c0_14 = arith.constant 0 : index
    %c0_15 = arith.constant 0 : index
    %18 = vector.load %arg3[%c1, %c0_14, %c0_15] : memref<2x128x128xbf16, #tpu.memory_space<vmem>>, vector<1x128x128xbf16>
    %19 = vector.shape_cast %18 : vector<1x128x128xbf16> to vector<128x128xbf16>
    %cst_16 = arith.constant dense<0.000000e+00> : vector<8x128xf32>
    %20 = tpu.matmul %17, %19, %cst_16 {dimension_numbers = #tpu.dot_dimension_numbers<[1], [0], [0], [1], [0, 0, 1, 1], [], []>} : vector<8x128xbf16>, vector<128x128xbf16>, vector<8x128xf32> -> vector<8x128xf32>
    %c1_17 = arith.constant 1 : index
    %c0_18 = arith.constant 0 : index
    %c0_19 = arith.constant 0 : index
    %21 = vector.load %arg4[%c1_17, %c0_18, %c0_19] : memref<2x8x128xf32, #tpu.memory_space<vmem>>, vector<1x8x128xf32>
    %22 = vector.shape_cast %21 : vector<1x8x128xf32> to vector<8x128xf32>
    %23 = arith.addf %20, %22 : vector<8x128xf32>
    %cst_20 = arith.constant 0.000000e+00 : f32
    %24 = vector.broadcast %cst_20 : f32 to vector<8x128xf32>
    %25 = arith.maximumf %23, %24 : vector<8x128xf32>
    %26 = arith.truncf %25 : vector<8x128xf32> to vector<8x128xbf16>
    %c0_21 = arith.constant 0 : index
    %c0_22 = arith.constant 0 : index
    %27 = vector.load %arg5[%c0_21, %c0_22] : memref<128x128xbf16, #tpu.memory_space<vmem>>, vector<128x128xbf16>
    %cst_23 = arith.constant dense<0.000000e+00> : vector<8x128xf32>
    %28 = tpu.matmul %26, %27, %cst_23 {dimension_numbers = #tpu.dot_dimension_numbers<[1], [0], [0], [1], [0, 0, 1, 1], [], []>} : vector<8x128xbf16>, vector<128x128xbf16>, vector<8x128xf32> -> vector<8x128xf32>
    %c0_24 = arith.constant 0 : index
    %c0_25 = arith.constant 0 : index
    %29 = vector.load %arg6[%c0_24, %c0_25] : memref<8x128xf32, #tpu.memory_space<vmem>>, vector<8x128xf32>
    %30 = arith.addf %28, %29 : vector<8x128xf32>
    %c0_26 = arith.constant 0 : index
    %c0_27 = arith.constant 0 : index
    %31 = vector.load %arg7[%c0_26, %c0_27] : memref<8x128xf32, #tpu.memory_space<vmem>>, vector<8x128xf32>
    tpu.vector_store %arg7[%c0_26, %c0_27], %30 {strides = array<i32>} : memref<8x128xf32, #tpu.memory_space<vmem>>, vector<8x128xf32>,
    return
  }
}

</mosaic_0001>

<llo_original>
// kernel: forward.1
$region0: #{forward.1}
  #allocation0 [shape = 'u32[]', space=smem, size = 0x4, offset = 0x4, fixed_abs, tag = 'smem constant byte address 0x4 - core index']
  #allocation1 [shape = 'u32[72,128]{1,0:T(1,128)}', space=vmem, size = 0x9000, scoped, tag = 'internal scratch']
  %s0 = inlined_call_operand.vmem [shape: f32[8,128], index: 0, kind: input, shape index: {}]
  %s1 = inlined_call_operand.hbm [shape: bf16[128,128], index: 1, kind: input, shape index: {}]
  %s2 = inlined_call_operand.vmem [shape: f32[8,128], index: 2, kind: input, shape index: {}]
  %s3 = inlined_call_operand.hbm [shape: bf16[2,128,128], index: 3, kind: input, shape index: {}]
  %s4 = inlined_call_operand.vmem [shape: f32[2,8,128], index: 4, kind: input, shape index: {}]
  %s5 = inlined_call_operand.hbm [shape: bf16[128,128], index: 5, kind: input, shape index: {}]
  %s6 = inlined_call_operand.vmem [shape: f32[8,128], index: 6, kind: input, shape index: {}]
  %s7 = inlined_call_operand.hbm [shape: f32[8,128], index: 7, kind: output, shape index: {}]
  %s8 = sld [smem:[#allocation0]]
  $region50: #{forward.1} parent=0
    _
  %s10 = ssub.s32 1, %s8
  %s11 = scalar_select 0, %s10, %s8
  $region1: #{forward.1} parent=0
    #allocation2 [shape = 'u8[32768]{0}', space=vmem, size = 0x8000, scoped, tag = 'input window, operand 1, single buffered']
    #allocation3 [shape = 's32[1]{0}', space=sflag, size = 0x4, scoped, tag = 'scoped memory for forward.1']
    #allocation4 [shape = 's32[1]{0}', space=sflag, size = 0x4, scoped, tag = 'scoped memory for forward.1']
    #allocation5 [shape = 'u8[65536]{0}', space=vmem, size = 0x10000, scoped, tag = 'input window, operand 3, single buffered']
    #allocation6 [shape = 's32[1]{0}', space=sflag, size = 0x4, scoped, tag = 'scoped memory for forward.1']
    #allocation7 [shape = 'u8[32768]{0}', space=vmem, size = 0x8000, scoped, tag = 'input window, operand 5, single buffered']
    #allocation8 [shape = 'u8[4096]{0}', space=vmem, size = 0x1000, scoped, tag = 'output window, operand 0, single buffered']
    %12 = vsyncpa [#allocation3], 0
    %13 = vsyncpa [#allocation6], 0
    %14 = vsyncpa [#allocation4], 0
    // Predicated region
    $region2: #{forward.1} parent=1 // pred_check
      _
    $region3: #{forward.1} parent=1 // pred_check_branch
      %16 = sbr.rel (0) target = $region5
    $region4: #{forward.1} parent=1 // pred_region
      _
    $region5: #{forward.1} parent=1 // pred_fallthru
      _
    // Predicated region
    $region6: #{forward.1} parent=1 // pred_check
      _
    $region7: #{forward.1} parent=1 // pred_check_branch
      %18 = sbr.rel (0) target = $region9
    $region8: #{forward.1} parent=1 // pred_region
      %20 = vsyncadd [#allocation3], 0
      %s21 = sshll.u32 %s1, 4
      %s22 = int_to_ptr.hbm [resolvable:$true] %s21
      %s23 = sshll.u32 [#allocation2], 4
      %s24 = int_to_ptr.vmem [resolvable:$true] %s23
      %29 = dma.hbm_to_vmem [thread:$0]  %s22, 1024, %s24, [#allocation3], 64, 64, 4
    $region9: #{forward.1} parent=1 // pred_fallthru
      _
    // Predicated region
    $region10: #{forward.1} parent=1 // pred_check
      _
    $region11: #{forward.1} parent=1 // pred_check_branch
      %31 = sbr.rel (0) target = $region13
    $region12: #{forward.1} parent=1 // pred_region
      _
    $region13: #{forward.1} parent=1 // pred_fallthru
      _
    // Predicated region
    $region14: #{forward.1} parent=1 // pred_check
      _
    $region15: #{forward.1} parent=1 // pred_check_branch
      %33 = sbr.rel (0) target = $region17
    $region16: #{forward.1} parent=1 // pred_region
      %35 = vsyncadd [#allocation6], 0
      %s36 = sshll.u32 %s3, 4
      %s37 = int_to_ptr.hbm [resolvable:$true] %s36
      %s38 = sshll.u32 [#allocation5], 4
      %s39 = int_to_ptr.vmem [resolvable:$true] %s38
      %44 = dma.hbm_to_vmem [thread:$0]  %s37, 2048, %s39, [#allocation6], 64, 64, 4
    $region17: #{forward.1} parent=1 // pred_fallthru
      _
    // Predicated region
    $region18: #{forward.1} parent=1 // pred_check
      _
    $region19: #{forward.1} parent=1 // pred_check_branch
      %46 = sbr.rel (0) target = $region21
    $region20: #{forward.1} parent=1 // pred_region
      _
    $region21: #{forward.1} parent=1 // pred_fallthru
      _
    // Predicated region
    $region22: #{forward.1} parent=1 // pred_check
      _
    $region23: #{forward.1} parent=1 // pred_check_branch
      %48 = sbr.rel (0) target = $region25
    $region24: #{forward.1} parent=1 // pred_region
      %50 = vsyncadd [#allocation6], 0
      %s51 = sshll.u32 %s5, 4
      %s52 = int_to_ptr.hbm [resolvable:$true] %s51
      %s53 = sshll.u32 [#allocation7], 4
      %s54 = int_to_ptr.vmem [resolvable:$true] %s53
      %59 = dma.hbm_to_vmem [thread:$0]  %s52, 1024, %s54, [#allocation6], 64, 64, 4
    $region25: #{forward.1} parent=1 // pred_fallthru
      _
    // Predicated region
    $region26: #{forward.1} parent=1 // pred_check
      _
    $region27: #{forward.1} parent=1 // pred_check_branch
      %61 = sbr.rel (0) target = $region29
    $region28: #{forward.1} parent=1 // pred_region
      _
    $region29: #{forward.1} parent=1 // pred_fallthru
      _
    // Predicated region
    $region30: #{forward.1} parent=1 // pred_check
      _
    $region31: #{forward.1} parent=1 // pred_check_branch
      %63 = sbr.rel (0) target = $region33
    $region32: #{forward.1} parent=1 // pred_region
      %65 = dma.done [#allocation3], 1024
    $region33: #{forward.1} parent=1 // pred_fallthru
      _
    // Predicated region
    $region34: #{forward.1} parent=1 // pred_check
      _
    $region35: #{forward.1} parent=1 // pred_check_branch
      %67 = sbr.rel (0) target = $region37
    $region36: #{forward.1} parent=1 // pred_region
      %69 = dma.done [#allocation6], 2048
    $region37: #{forward.1} parent=1 // pred_fallthru
      _
    // Predicated region
    $region38: #{forward.1} parent=1 // pred_check
      _
    $region39: #{forward.1} parent=1 // pred_check_branch
      %71 = sbr.rel (0) target = $region41
    $region40: #{forward.1} parent=1 // pred_region
      %73 = dma.done [#allocation6], 1024
    $region41: #{forward.1} parent=1 // pred_fallthru
      _
    %v74 = vld [vmem:[%s0] sm:$0xff]
    %v75 = vpack.c.bf16 %v74, %v74
    %v76 = vld [vmem:[#allocation2] sm:$0xf]
    %v77 = vld [vmem:[#allocation2 + $0x4] sm:$0xf]
    %v78 = vld [vmem:[#allocation2 + $0x8] sm:$0xf]
    %v79 = vld [vmem:[#allocation2 + $0xc] sm:$0xf]
    %v80 = vld [vmem:[#allocation2 + $0x10] sm:$0xf]
    %v81 = vld [vmem:[#allocation2 + $0x14] sm:$0xf]
    %v82 = vld [vmem:[#allocation2 + $0x18] sm:$0xf]
    %v83 = vld [vmem:[#allocation2 + $0x1c] sm:$0xf]
    %v84 = vld [vmem:[#allocation2 + $0x20] sm:$0xf]
    %v85 = vld [vmem:[#allocation2 + $0x24] sm:$0xf]
    %v86 = vld [vmem:[#allocation2 + $0x28] sm:$0xf]
    %v87 = vld [vmem:[#allocation2 + $0x2c] sm:$0xf]
    %v88 = vld [vmem:[#allocation2 + $0x30] sm:$0xf]
    %v89 = vld [vmem:[#allocation2 + $0x34] sm:$0xf]
    %v90 = vld [vmem:[#allocation2 + $0x38] sm:$0xf]
    %v91 = vld [vmem:[#allocation2 + $0x3c] sm:$0xf]
    %v92 = vld [vmem:[%s2] sm:$0xff]
    %v109 = vunpack.c.l.b16 %v76
    %v110 = vunpack.c.l.b16 %v77
    %v111 = vunpack.c.l.b16 %v78
    %v112 = vunpack.c.l.b16 %v79
    %v113 = vunpack.c.l.b16 %v80
    %v114 = vunpack.c.l.b16 %v81
    %v115 = vunpack.c.l.b16 %v82
    %v116 = vunpack.c.l.b16 %v83
    %v117 = vunpack.c.l.b16 %v84
    %v118 = vunpack.c.l.b16 %v85
    %v119 = vunpack.c.l.b16 %v86
    %v120 = vunpack.c.l.b16 %v87
    %v121 = vunpack.c.l.b16 %v88
    %v122 = vunpack.c.l.b16 %v89
    %v123 = vunpack.c.l.b16 %v90
    %v124 = vunpack.c.l.b16 %v91
    %v125 = vpack.c.b16 %v110, %v109
    %v126 = vpack.c.b16 %v112, %v111
    %v127 = vpack.c.b16 %v114, %v113
    %v128 = vpack.c.b16 %v116, %v115
    %v129 = vpack.c.b16 %v118, %v117
    %v130 = vpack.c.b16 %v120, %v119
    %v131 = vpack.c.b16 %v122, %v121
    %v132 = vpack.c.b16 %v124, %v123
    %141 = vmatpush.bf16.msra.mxu0 %v132
    %142 = vmatpush.bf16.msra.mxu0 %v131
    %143 = vmatpush.bf16.msra.mxu0 %v130
    %144 = vmatpush.bf16.msra.mxu0 %v129
    %145 = vmatpush.bf16.msra.mxu0 %v128
    %146 = vmatpush.bf16.msra.mxu0 %v127
    %147 = vmatpush.bf16.msra.mxu0 %v126
    %148 = vmatpush.bf16.msra.mxu0 %v125
    %149 = vmatmul.bf16.gmra.mxu0 %v75
    %v150 = vpop.f32.mrf.mxu0
    %v151 = vadd.f32 %v92, %v150
    %v152 = vpop.f32.mrf.mxu0
    %153 = vdwg.mxu0
    %v154 = vmax.f32 %v151, 0.0
    %v155 = vpack.c.bf16 %v154, %v154
    %v156 = vld [vmem:[#allocation5] sm:$0xf]
    %v157 = vld [vmem:[#allocation5 + $0x4] sm:$0xf]
    %v158 = vld [vmem:[#allocation5 + $0x8] sm:$0xf]
    %v159 = vld [vmem:[#allocation5 + $0xc] sm:$0xf]
    %v160 = vld [vmem:[#allocation5 + $0x10] sm:$0xf]
    %v161 = vld [vmem:[#allocation5 + $0x14] sm:$0xf]
    %v162 = vld [vmem:[#allocation5 + $0x18] sm:$0xf]
    %v163 = vld [vmem:[#allocation5 + $0x1c] sm:$0xf]
    %v164 = vld [vmem:[#allocation5 + $0x20] sm:$0xf]
    %v165 = vld [vmem:[#allocation5 + $0x24] sm:$0xf]
    %v166 = vld [vmem:[#allocation5 + $0x28] sm:$0xf]
    %v167 = vld [vmem:[#allocation5 + $0x2c] sm:$0xf]
    %v168 = vld [vmem:[#allocation5 + $0x30] sm:$0xf]
    %v169 = vld [vmem:[#allocation5 + $0x34] sm:$0xf]
    %v170 = vld [vmem:[#allocation5 + $0x38] sm:$0xf]
    %v171 = vld [vmem:[#allocation5 + $0x3c] sm:$0xf]
    %v172 = vld [vmem:[%s4] sm:$0xff]
    %v189 = vunpack.c.l.b16 %v156
    %v190 = vunpack.c.l.b16 %v157
    %v191 = vunpack.c.l.b16 %v158
    %v192 = vunpack.c.l.b16 %v159
    %v193 = vunpack.c.l.b16 %v160
    %v194 = vunpack.c.l.b16 %v161
    %v195 = vunpack.c.l.b16 %v162
    %v196 = vunpack.c.l.b16 %v163
    %v197 = vunpack.c.l.b16 %v164
    %v198 = vunpack.c.l.b16 %v165
    %v199 = vunpack.c.l.b16 %v166
    %v200 = vunpack.c.l.b16 %v167
    %v201 = vunpack.c.l.b16 %v168
    %v202 = vunpack.c.l.b16 %v169
    %v203 = vunpack.c.l.b16 %v170
    %v204 = vunpack.c.l.b16 %v171
    %v205 = vpack.c.b16 %v190, %v189
    %v206 = vpack.c.b16 %v192, %v191
    %v207 = vpack.c.b16 %v194, %v193
    %v208 = vpack.c.b16 %v196, %v195
    %v209 = vpack.c.b16 %v198, %v197
    %v210 = vpack.c.b16 %v200, %v199
    %v211 = vpack.c.b16 %v202, %v201
    %v212 = vpack.c.b16 %v204, %v203
    %221 = vmatpush.bf16.msra.mxu0 %v212
    %222 = vmatpush.bf16.msra.mxu0 %v211
    %223 = vmatpush.bf16.msra.mxu0 %v210
    %224 = vmatpush.bf16.msra.mxu0 %v209
    %225 = vmatpush.bf16.msra.mxu0 %v208
    %226 = vmatpush.bf16.msra.mxu0 %v207
    %227 = vmatpush.bf16.msra.mxu0 %v206
    %228 = vmatpush.bf16.msra.mxu0 %v205
    %229 = vmatmul.bf16.gmra.mxu0 %v155
    %v230 = vpop.f32.mrf.mxu0
    %v231 = vadd.f32 %v172, %v230
    %v232 = vpop.f32.mrf.mxu0
    %233 = vdwg.mxu0
    %v234 = vmax.f32 %v231, 0.0
    %v235 = vpack.c.bf16 %v234, %v234
    %s236 = scalar_lea.vmem [#allocation5], 64
    %v237 = vld [vmem:[%s236] sm:$0xf]
    %v238 = vld [vmem:[%s236 + $0x4] sm:$0xf]
    %v239 = vld [vmem:[%s236 + $0x8] sm:$0xf]
    %v240 = vld [vmem:[%s236 + $0xc] sm:$0xf]
    %v241 = vld [vmem:[%s236 + $0x10] sm:$0xf]
    %v242 = vld [vmem:[%s236 + $0x14] sm:$0xf]
    %v243 = vld [vmem:[%s236 + $0x18] sm:$0xf]
    %v244 = vld [vmem:[%s236 + $0x1c] sm:$0xf]
    %v245 = vld [vmem:[%s236 + $0x20] sm:$0xf]
    %v246 = vld [vmem:[%s236 + $0x24] sm:$0xf]
    %v247 = vld [vmem:[%s236 + $0x28] sm:$0xf]
    %v248 = vld [vmem:[%s236 + $0x2c] sm:$0xf]
    %v249 = vld [vmem:[%s236 + $0x30] sm:$0xf]
    %v250 = vld [vmem:[%s236 + $0x34] sm:$0xf]
    %v251 = vld [vmem:[%s236 + $0x38] sm:$0xf]
    %v252 = vld [vmem:[%s236 + $0x3c] sm:$0xf]
    %s253 = scalar_lea.vmem %s4, 8
    %v254 = vld [vmem:[%s253] sm:$0xff]
    %v271 = vunpack.c.l.b16 %v237
    %v272 = vunpack.c.l.b16 %v238
    %v273 = vunpack.c.l.b16 %v239
    %v274 = vunpack.c.l.b16 %v240
    %v275 = vunpack.c.l.b16 %v241
    %v276 = vunpack.c.l.b16 %v242
    %v277 = vunpack.c.l.b16 %v243
    %v278 = vunpack.c.l.b16 %v244
    %v279 = vunpack.c.l.b16 %v245
    %v280 = vunpack.c.l.b16 %v246
    %v281 = vunpack.c.l.b16 %v247
    %v282 = vunpack.c.l.b16 %v248
    %v283 = vunpack.c.l.b16 %v249
    %v284 = vunpack.c.l.b16 %v250
    %v285 = vunpack.c.l.b16 %v251
    %v286 = vunpack.c.l.b16 %v252
    %v287 = vpack.c.b16 %v272, %v271
    %v288 = vpack.c.b16 %v274, %v273
    %v289 = vpack.c.b16 %v276, %v275
    %v290 = vpack.c.b16 %v278, %v277
    %v291 = vpack.c.b16 %v280, %v279
    %v292 = vpack.c.b16 %v282, %v281
    %v293 = vpack.c.b16 %v284, %v283
    %v294 = vpack.c.b16 %v286, %v285
    %303 = vmatpush.bf16.msra.mxu0 %v294
    %304 = vmatpush.bf16.msra.mxu0 %v293
    %305 = vmatpush.bf16.msra.mxu0 %v292
    %306 = vmatpush.bf16.msra.mxu0 %v291
    %307 = vmatpush.bf16.msra.mxu0 %v290
    %308 = vmatpush.bf16.msra.mxu0 %v289
    %309 = vmatpush.bf16.msra.mxu0 %v288
    %310 = vmatpush.bf16.msra.mxu0 %v287
    %311 = vmatmul.bf16.gmra.mxu0 %v235
    %v312 = vpop.f32.mrf.mxu0
    %v313 = vadd.f32 %v254, %v312
    %v314 = vpop.f32.mrf.mxu0
    %315 = vdwg.mxu0
    %v316 = vmax.f32 %v313, 0.0
    %v317 = vpack.c.bf16 %v316, %v316
    %v318 = vld [vmem:[#allocation7] sm:$0xf]
    %v319 = vld [vmem:[#allocation7 + $0x4] sm:$0xf]
    %v320 = vld [vmem:[#allocation7 + $0x8] sm:$0xf]
    %v321 = vld [vmem:[#allocation7 + $0xc] sm:$0xf]
    %v322 = vld [vmem:[#allocation7 + $0x10] sm:$0xf]
    %v323 = vld [vmem:[#allocation7 + $0x14] sm:$0xf]
    %v324 = vld [vmem:[#allocation7 + $0x18] sm:$0xf]
    %v325 = vld [vmem:[#allocation7 + $0x1c] sm:$0xf]
    %v326 = vld [vmem:[#allocation7 + $0x20] sm:$0xf]
    %v327 = vld [vmem:[#allocation7 + $0x24] sm:$0xf]
    %v328 = vld [vmem:[#allocation7 + $0x28] sm:$0xf]
    %v329 = vld [vmem:[#allocation7 + $0x2c] sm:$0xf]
    %v330 = vld [vmem:[#allocation7 + $0x30] sm:$0xf]
    %v331 = vld [vmem:[#allocation7 + $0x34] sm:$0xf]
    %v332 = vld [vmem:[#allocation7 + $0x38] sm:$0xf]
    %v333 = vld [vmem:[#allocation7 + $0x3c] sm:$0xf]
    %v334 = vld [vmem:[%s6] sm:$0xff]
    %v351 = vunpack.c.l.b16 %v318
    %v352 = vunpack.c.l.b16 %v319
    %v353 = vunpack.c.l.b16 %v320
    %v354 = vunpack.c.l.b16 %v321
    %v355 = vunpack.c.l.b16 %v322
    %v356 = vunpack.c.l.b16 %v323
    %v357 = vunpack.c.l.b16 %v324
    %v358 = vunpack.c.l.b16 %v325
    %v359 = vunpack.c.l.b16 %v326
    %v360 = vunpack.c.l.b16 %v327
    %v361 = vunpack.c.l.b16 %v328
    %v362 = vunpack.c.l.b16 %v329
    %v363 = vunpack.c.l.b16 %v330
    %v364 = vunpack.c.l.b16 %v331
    %v365 = vunpack.c.l.b16 %v332
    %v366 = vunpack.c.l.b16 %v333
    %v367 = vpack.c.b16 %v352, %v351
    %v368 = vpack.c.b16 %v354, %v353
    %v369 = vpack.c.b16 %v356, %v355
    %v370 = vpack.c.b16 %v358, %v357
    %v371 = vpack.c.b16 %v360, %v359
    %v372 = vpack.c.b16 %v362, %v361
    %v373 = vpack.c.b16 %v364, %v363
    %v374 = vpack.c.b16 %v366, %v365
    %383 = vmatpush.bf16.msra.mxu0 %v374
    %384 = vmatpush.bf16.msra.mxu0 %v373
    %385 = vmatpush.bf16.msra.mxu0 %v372
    %386 = vmatpush.bf16.msra.mxu0 %v371
    %387 = vmatpush.bf16.msra.mxu0 %v370
    %388 = vmatpush.bf16.msra.mxu0 %v369
    %389 = vmatpush.bf16.msra.mxu0 %v368
    %390 = vmatpush.bf16.msra.mxu0 %v367
    %391 = vmatmul.bf16.gmra.mxu0 %v317
    %v392 = vpop.f32.mrf.mxu0
    %v393 = vadd.f32 %v334, %v392
    %v394 = vpop.f32.mrf.mxu0
    %395 = vdwg.mxu0
    %396 = vst [vmem:[#allocation8] sm:$0xff] %v393
    // Predicated region
    $region42: #{forward.1} parent=1 // pred_check
      _
    $region43: #{forward.1} parent=1 // pred_check_branch
      %398 = sbr.rel (0) target = $region45
    $region44: #{forward.1} parent=1 // pred_region
      %400 = vsyncadd [#allocation4], 0
      %s402 = sshll.u32 [#allocation8], 4
      %s403 = int_to_ptr.vmem [resolvable:$true] %s402
      %s404 = sshll.u32 %s7, 4
      %s405 = int_to_ptr.hbm [resolvable:$true] %s404
      %407 = dma.vmem_to_hbm [thread:$0]  %s403, 128, %s405, [#allocation4]
    $region45: #{forward.1} parent=1 // pred_fallthru
      _
    // Predicated region
    $region46: #{forward.1} parent=1 // pred_check
      _
    $region47: #{forward.1} parent=1 // pred_check_branch
      %409 = sbr.rel (0) target = $region49
    $region48: #{forward.1} parent=1 // pred_region
      %411 = dma.done [#allocation4], 128
    $region49: #{forward.1} parent=1 // pred_fallthru
      _
    %412 = vsyncpa [#allocation3], 1
    %413 = vsyncpa [#allocation6], 1
    %414 = vsyncpa [#allocation4], 1

</llo_original>
